<compile_context>
chip_gen: v7x
topology: tpu7x:2x2x1
jax: 0.10.0
libtpu: 0.0.40
codegen_flags: <defaults>
</compile_context>

<pallas_src>
import functools
import math

import jax
import jax.numpy as jnp
from jax import lax
from jax.experimental import pallas as pl
from jax.experimental.pallas import tpu as pltpu


def _mha_kernel(x_ref, mask_ref,
                wq_ref, bq_ref, wk_ref, bk_ref, wv_ref, bv_ref,
                wd_ref, bd_ref, gamma_ref, beta_ref,
                o_ref, *,
                batch_block, seq_len, num_heads, head_dim, eps):
    Bt, L, nH, dH = batch_block, seq_len, num_heads, head_dim
    inv_scale = 1.0 / math.sqrt(dH)

    x_f32 = x_ref[...]                        # (Bt*L, H) f32 — kept for residual/LN
    x_bf16 = x_f32.astype(jnp.bfloat16)       # bf16 operand for the MXU

    # --- fused Q/K/V projections over all Bt*L rows (bf16 MXU, f32 accumulate) ---
    q = jnp.dot(x_bf16, wq_ref[...], preferred_element_type=jnp.float32) + bq_ref[...]
    k = jnp.dot(x_bf16, wk_ref[...], preferred_element_type=jnp.float32) + bk_ref[...]
    v = jnp.dot(x_bf16, wv_ref[...], preferred_element_type=jnp.float32) + bv_ref[...]
    q = q.astype(jnp.bfloat16)
    k = k.astype(jnp.bfloat16)
    v = v.astype(jnp.bfloat16)

    # --- per-batch, per-head attention (static unrolled loops, all 2-D matmuls) ---
    ctx_rows = []
    for b in range(Bt):
        mask_b = mask_ref[b]                  # (L, L) additive mask, f32
        qb = q[b * L:(b + 1) * L, :]
        kb = k[b * L:(b + 1) * L, :]
        vb = v[b * L:(b + 1) * L, :]
        head_ctx = []
        for h in range(nH):
            qh = qb[:, h * dH:(h + 1) * dH]
            kh = kb[:, h * dH:(h + 1) * dH]
            vh = vb[:, h * dH:(h + 1) * dH]
            # scores = Q K^T / sqrt(dH) + mask   (f32)
            s = jnp.einsum('qd,kd->qk', qh, kh,
                           preferred_element_type=jnp.float32)
            s = s * inv_scale + mask_b
            # softmax: exp on EUP, approx reciprocal on EUP (no VALU divide)
            m = jnp.max(s, axis=-1, keepdims=True)
            e = jnp.exp(s - m)
            denom = jnp.sum(e, axis=-1, keepdims=True)
            p = e * pl.reciprocal(denom, approx=True)
            # TODO(synk): attn_dropout is identity (eval-mode forward).
            ctx = jnp.einsum('qk,kd->qd', p.astype(jnp.bfloat16), vh,
                             preferred_element_type=jnp.float32)
            head_ctx.append(ctx)
        ctx_rows.append(jnp.concatenate(head_ctx, axis=-1))          # (L, H)
    context = jnp.concatenate(ctx_rows, axis=0) if Bt > 1 else ctx_rows[0]

    # --- output projection + residual + LayerNorm ---
    hidden = jnp.dot(context.astype(jnp.bfloat16), wd_ref[...],
                     preferred_element_type=jnp.float32) + bd_ref[...]
    # TODO(synk): out_dropout is identity (eval-mode forward).
    z = hidden + x_f32
    mu = jnp.mean(z, axis=-1, keepdims=True)
    d = z - mu
    var = jnp.mean(d * d, axis=-1, keepdims=True)
    zn = d * lax.rsqrt(var + eps)             # rsqrt -> EUP slot
    o_ref[...] = gamma_ref[...] * zn + beta_ref[...]


def multi_head_attention(x, attention_mask, params, *, num_heads,
                         batch_block=1, eps=1e-12):
    """x: (B, L, H) f32; attention_mask: additive, broadcastable to (B, L, L).

    params: dict with wq/wk/wv/wd (H, H) laid out for right-multiplication
    (x @ W), bq/bk/bv/bd (H,), ln_weight/ln_bias (H,).
    """
    B, L, H = x.shape
    assert H % num_heads == 0
    assert B % batch_block == 0
    Bt = batch_block
    dH = H // num_heads
    f32, bf16 = jnp.float32, jnp.bfloat16

    x2d = x.reshape(B * L, H).astype(f32)
    mask = jnp.broadcast_to(attention_mask.astype(f32), (B, L, L))

    wq, wk, wv, wd = (params[n].astype(bf16) for n in ('wq', 'wk', 'wv', 'wd'))
    bq, bk, bv, bd = (params[n].reshape(1, H).astype(f32)
                      for n in ('bq', 'bk', 'bv', 'bd'))
    gamma = params['ln_weight'].reshape(1, H).astype(f32)
    beta = params['ln_bias'].reshape(1, H).astype(f32)

    kernel = functools.partial(
        _mha_kernel, batch_block=Bt, seq_len=L,
        num_heads=num_heads, head_dim=dH, eps=eps)

    row_block = Bt * L
    w_spec = pl.BlockSpec((H, H), lambda i: (0, 0))
    vec_spec = pl.BlockSpec((1, H), lambda i: (0, 0))

    out2d = pl.pallas_call(
        kernel,
        out_shape=jax.ShapeDtypeStruct((B * L, H), f32),
        grid=(B // Bt,),
        in_specs=[
            pl.BlockSpec((row_block, H), lambda i: (i, 0)),   # x (flattened B,L)
            pl.BlockSpec((Bt, L, L), lambda i: (i, 0, 0)),    # additive mask
            w_spec, vec_spec,                                 # Wq, bq
            w_spec, vec_spec,                                 # Wk, bk
            w_spec, vec_spec,                                 # Wv, bv
            w_spec, vec_spec,                                 # Wd, bd
            vec_spec, vec_spec,                               # LN gamma, beta
        ],
        out_specs=pl.BlockSpec((row_block, H), lambda i: (i, 0)),
        compiler_params=pltpu.CompilerParams(
            dimension_semantics=("parallel",)),
    )(x2d, mask, wq, bq, wk, bk, wv, bv, wd, bd, gamma, beta)

    return out2d.reshape(B, L, H)


def mha_reference(x, attention_mask, params, *, num_heads, eps=1e-12):
    """Pure-JAX f32 reference following the PyTorch forward exactly (eval mode)."""
    B, L, H = x.shape
    dH = H // num_heads
    q = x @ params['wq'] + params['bq']
    k = x @ params['wk'] + params['bk']
    v = x @ params['wv'] + params['bv']

    def split(t):
        return t.reshape(B, L, num_heads, dH).transpose(0, 2, 1, 3)   # (B,nH,L,dH)

    qh, kh, vh = split(q), split(k), split(v)
    scores = jnp.einsum('bhqd,bhkd->bhqk', qh, kh) / math.sqrt(dH)
    scores = scores + jnp.broadcast_to(attention_mask, (B, L, L))[:, None, :, :]
    probs = jax.nn.softmax(scores, axis=-1)
    ctx = jnp.einsum('bhqk,bhkd->bhqd', probs, vh)
    ctx = ctx.transpose(0, 2, 1, 3).reshape(B, L, H)
    hidden = ctx @ params['wd'] + params['bd']
    z = hidden + x
    mu = jnp.mean(z, axis=-1, keepdims=True)
    var = jnp.mean((z - mu) ** 2, axis=-1, keepdims=True)
    zn = (z - mu) / jnp.sqrt(var + eps)
    return params['ln_weight'] * zn + params['ln_bias']


if __name__ == "__main__":
    # Small config consistent with the module:
    #   f_hidden_size=32, num_attention_heads=2 (head size 16), seq_len=8, batch=2.
    B, L, H, nH = 2, 8, 32, 2

    key = jax.random.PRNGKey(0)
    ks = jax.random.split(key, 11)
    x = jax.random.normal(ks[0], (B, L, H), dtype=jnp.float32)
    scale = 0.125
    params = {
        'wq': scale * jax.random.normal(ks[1], (H, H), jnp.float32),
        'bq': scale * jax.random.normal(ks[2], (H,), jnp.float32),
        'wk': scale * jax.random.normal(ks[3], (H, H), jnp.float32),
        'bk': scale * jax.random.normal(ks[4], (H,), jnp.float32),
        'wv': scale * jax.random.normal(ks[5], (H, H), jnp.float32),
        'bv': scale * jax.random.normal(ks[6], (H,), jnp.float32),
        'wd': scale * jax.random.normal(ks[7], (H, H), jnp.float32),
        'bd': scale * jax.random.normal(ks[8], (H,), jnp.float32),
        'ln_weight': 1.0 + 0.1 * jax.random.normal(ks[9], (H,), jnp.float32),
        'ln_bias': 0.1 * jax.random.normal(ks[10], (H,), jnp.float32),
    }

    # BERT-style additive mask: batch 0 attends to all 8 keys, batch 1 to the first 6.
    valid_len = jnp.array([8, 6])
    key_valid = jnp.arange(L)[None, :] < valid_len[:, None]           # (B, L)
    mask = jnp.where(key_valid, 0.0, -1e4).astype(jnp.float32)[:, None, :]
    mask = jnp.broadcast_to(mask, (B, L, L))

    out = multi_head_attention(x, mask, params, num_heads=nH, batch_block=1)
    out = jax.block_until_ready(out)

    ref = mha_reference(x, mask, params, num_heads=nH)
    assert out.shape == (B, L, H)
    max_err = float(jnp.max(jnp.abs(out - ref)))
    assert jnp.allclose(out, ref, atol=5e-2, rtol=5e-2), (
        f"mismatch vs reference, max abs err {max_err}")

    print("KERNEL_OK")
</pallas_src>

<mosaic_0001>
module attributes {stable_mosaic.version = 11 : i64} {
  func.func @_mha_kernel(%arg0: i32, %arg1: memref<8x32xf32, #tpu.memory_space<vmem>>, %arg2: memref<1x8x8xf32, #tpu.memory_space<vmem>>, %arg3: memref<32x32xbf16, #tpu.memory_space<vmem>>, %arg4: memref<1x32xf32, #tpu.memory_space<vmem>>, %arg5: memref<32x32xbf16, #tpu.memory_space<vmem>>, %arg6: memref<1x32xf32, #tpu.memory_space<vmem>>, %arg7: memref<32x32xbf16, #tpu.memory_space<vmem>>, %arg8: memref<1x32xf32, #tpu.memory_space<vmem>>, %arg9: memref<32x32xbf16, #tpu.memory_space<vmem>>, %arg10: memref<1x32xf32, #tpu.memory_space<vmem>>, %arg11: memref<1x32xf32, #tpu.memory_space<vmem>>, %arg12: memref<1x32xf32, #tpu.memory_space<vmem>>, %arg13: memref<8x32xf32, #tpu.memory_space<vmem>>) attributes {dimension_semantics = [#tpu.dimension_semantics<parallel>], iteration_bounds = array<i64: 2>, scalar_prefetch = 0 : i64, scratch_operands = 0 : i64, tpu.core_type = #tpu.core_type<tc>, window_params = [{transform_indices = @transform_0, window_bounds = array<i64: 8, 32>}, {transform_indices = @transform_1, window_bounds = array<i64: 1, 8, 8>}, {pipeline_mode = #tpu.pipeline_mode<synchronous>, transform_indices = @transform_2, window_bounds = array<i64: 32, 32>}, {pipeline_mode = #tpu.pipeline_mode<synchronous>, transform_indices = @transform_3, window_bounds = array<i64: 1, 32>}, {pipeline_mode = #tpu.pipeline_mode<synchronous>, transform_indices = @transform_4, window_bounds = array<i64: 32, 32>}, {pipeline_mode = #tpu.pipeline_mode<synchronous>, transform_indices = @transform_5, window_bounds = array<i64: 1, 32>}, {pipeline_mode = #tpu.pipeline_mode<synchronous>, transform_indices = @transform_6, window_bounds = array<i64: 32, 32>}, {pipeline_mode = #tpu.pipeline_mode<synchronous>, transform_indices = @transform_7, window_bounds = array<i64: 1, 32>}, {pipeline_mode = #tpu.pipeline_mode<synchronous>, transform_indices = @transform_8, window_bounds = array<i64: 32, 32>}, {pipeline_mode = #tpu.pipeline_mode<synchronous>, transform_indices = @transform_9, window_bounds = array<i64: 1, 32>}, {pipeline_mode = #tpu.pipeline_mode<synchronous>, transform_indices = @transform_10, window_bounds = array<i64: 1, 32>}, {pipeline_mode = #tpu.pipeline_mode<synchronous>, transform_indices = @transform_11, window_bounds = array<i64: 1, 32>}, {transform_indices = @transform_12, window_bounds = array<i64: 8, 32>}]} {
    %c0 = arith.constant 0 : index
    %c0_0 = arith.constant 0 : index
    %0 = vector.load %arg1[%c0, %c0_0] : memref<8x32xf32, #tpu.memory_space<vmem>>, vector<8x32xf32>
    %1 = arith.truncf %0 : vector<8x32xf32> to vector<8x32xbf16>
    %c0_1 = arith.constant 0 : index
    %c0_2 = arith.constant 0 : index
    %2 = vector.load %arg3[%c0_1, %c0_2] : memref<32x32xbf16, #tpu.memory_space<vmem>>, vector<32x32xbf16>
    %cst = arith.constant dense<0.000000e+00> : vector<8x32xf32>
    %3 = tpu.matmul %1, %2, %cst {dimension_numbers = #tpu.dot_dimension_numbers<[1], [0], [0], [1], [0, 0, 1, 1], [], []>} : vector<8x32xbf16>, vector<32x32xbf16>, vector<8x32xf32> -> vector<8x32xf32>
    %c0_3 = arith.constant 0 : index
    %c0_4 = arith.constant 0 : index
    %4 = vector.load %arg4[%c0_3, %c0_4] : memref<1x32xf32, #tpu.memory_space<vmem>>, vector<1x32xf32>
    %5 = vector.broadcast %4 : vector<1x32xf32> to vector<8x32xf32>
    %6 = arith.addf %3, %5 : vector<8x32xf32>
    %c0_5 = arith.constant 0 : index
    %c0_6 = arith.constant 0 : index
    %7 = vector.load %arg5[%c0_5, %c0_6] : memref<32x32xbf16, #tpu.memory_space<vmem>>, vector<32x32xbf16>
    %cst_7 = arith.constant dense<0.000000e+00> : vector<8x32xf32>
    %8 = tpu.matmul %1, %7, %cst_7 {dimension_numbers = #tpu.dot_dimension_numbers<[1], [0], [0], [1], [0, 0, 1, 1], [], []>} : vector<8x32xbf16>, vector<32x32xbf16>, vector<8x32xf32> -> vector<8x32xf32>
    %c0_8 = arith.constant 0 : index
    %c0_9 = arith.constant 0 : index
    %9 = vector.load %arg6[%c0_8, %c0_9] : memref<1x32xf32, #tpu.memory_space<vmem>>, vector<1x32xf32>
    %10 = vector.broadcast %9 : vector<1x32xf32> to vector<8x32xf32>
    %11 = arith.addf %8, %10 : vector<8x32xf32>
    %c0_10 = arith.constant 0 : index
    %c0_11 = arith.constant 0 : index
    %12 = vector.load %arg7[%c0_10, %c0_11] : memref<32x32xbf16, #tpu.memory_space<vmem>>, vector<32x32xbf16>
    %cst_12 = arith.constant dense<0.000000e+00> : vector<8x32xf32>
    %13 = tpu.matmul %1, %12, %cst_12 {dimension_numbers = #tpu.dot_dimension_numbers<[1], [0], [0], [1], [0, 0, 1, 1], [], []>} : vector<8x32xbf16>, vector<32x32xbf16>, vector<8x32xf32> -> vector<8x32xf32>
    %c0_13 = arith.constant 0 : index
    %c0_14 = arith.constant 0 : index
    %14 = vector.load %arg8[%c0_13, %c0_14] : memref<1x32xf32, #tpu.memory_space<vmem>>, vector<1x32xf32>
    %15 = vector.broadcast %14 : vector<1x32xf32> to vector<8x32xf32>
    %16 = arith.addf %13, %15 : vector<8x32xf32>
    %17 = arith.truncf %6 : vector<8x32xf32> to vector<8x32xbf16>
    %18 = arith.truncf %11 : vector<8x32xf32> to vector<8x32xbf16>
    %19 = arith.truncf %16 : vector<8x32xf32> to vector<8x32xbf16>
    %c0_15 = arith.constant 0 : index
    %c0_16 = arith.constant 0 : index
    %c0_17 = arith.constant 0 : index
    %20 = vector.load %arg2[%c0_15, %c0_16, %c0_17] : memref<1x8x8xf32, #tpu.memory_space<vmem>>, vector<1x8x8xf32>
    %21 = vector.shape_cast %20 : vector<1x8x8xf32> to vector<8x8xf32>
    %22 = vector.extract_strided_slice %17 {offsets = [0, 0], sizes = [8, 16], strides = [1, 1]} : vector<8x32xbf16> to vector<8x16xbf16>
    %23 = vector.extract_strided_slice %18 {offsets = [0, 0], sizes = [8, 16], strides = [1, 1]} : vector<8x32xbf16> to vector<8x16xbf16>
    %24 = vector.extract_strided_slice %19 {offsets = [0, 0], sizes = [8, 16], strides = [1, 1]} : vector<8x32xbf16> to vector<8x16xbf16>
    "tpu.trace_start"() <{level = 10 : i32, message = "qd,kd->qk"}> : () -> ()
    %cst_18 = arith.constant dense<0.000000e+00> : vector<8x8xf32>
    %25 = tpu.matmul %22, %23, %cst_18 {dimension_numbers = #tpu.dot_dimension_numbers<[1], [1], [0], [0], [0, 0, 1, 0], [], []>} : vector<8x16xbf16>, vector<8x16xbf16>, vector<8x8xf32> -> vector<8x8xf32>
    "tpu.trace_stop"() : () -> ()
    %cst_19 = arith.constant 2.500000e-01 : f32
    %26 = vector.broadcast %cst_19 : f32 to vector<8x8xf32>
    %27 = arith.mulf %25, %26 : vector<8x8xf32>
    %28 = arith.addf %27, %21 : vector<8x8xf32>
    %cst_20 = arith.constant dense<0xFF800000> : vector<8xf32>
    %29 = vector.multi_reduction <maximumf>, %28, %cst_20 [1] : vector<8x8xf32> to vector<8xf32>
    %30 = vector.shape_cast %29 : vector<8xf32> to vector<8x1xf32>
    %31 = vector.broadcast %30 : vector<8x1xf32> to vector<8x8xf32>
    %32 = arith.subf %28, %31 : vector<8x8xf32>
    %33 = math.exp %32 : vector<8x8xf32>
    %cst_21 = arith.constant dense<0.000000e+00> : vector<8xf32>
    %34 = vector.multi_reduction <add>, %33, %cst_21 [1] : vector<8x8xf32> to vector<8xf32>
    %35 = vector.shape_cast %34 : vector<8xf32> to vector<8x1xf32>
    %36 = tpu.reciprocal %35 {approx = true} : vector<8x1xf32> -> vector<8x1xf32>
    %37 = vector.broadcast %36 : vector<8x1xf32> to vector<8x8xf32>
    %38 = arith.mulf %33, %37 : vector<8x8xf32>
    %39 = arith.truncf %38 : vector<8x8xf32> to vector<8x8xbf16>
    "tpu.trace_start"() <{level = 10 : i32, message = "qk,kd->qd"}> : () -> ()
    %cst_22 = arith.constant dense<0.000000e+00> : vector<8x16xf32>
    %40 = tpu.matmul %39, %24, %cst_22 {dimension_numbers = #tpu.dot_dimension_numbers<[1], [0], [0], [1], [0, 0, 1, 1], [], []>} : vector<8x8xbf16>, vector<8x16xbf16>, vector<8x16xf32> -> vector<8x16xf32>
    "tpu.trace_stop"() : () -> ()
    %41 = vector.extract_strided_slice %17 {offsets = [0, 16], sizes = [8, 16], strides = [1, 1]} : vector<8x32xbf16> to vector<8x16xbf16>
    %42 = vector.extract_strided_slice %18 {offsets = [0, 16], sizes = [8, 16], strides = [1, 1]} : vector<8x32xbf16> to vector<8x16xbf16>
    %43 = vector.extract_strided_slice %19 {offsets = [0, 16], sizes = [8, 16], strides = [1, 1]} : vector<8x32xbf16> to vector<8x16xbf16>
    "tpu.trace_start"() <{level = 10 : i32, message = "qd,kd->qk"}> : () -> ()
    %cst_23 = arith.constant dense<0.000000e+00> : vector<8x8xf32>
    %44 = tpu.matmul %41, %42, %cst_23 {dimension_numbers = #tpu.dot_dimension_numbers<[1], [1], [0], [0], [0, 0, 1, 0], [], []>} : vector<8x16xbf16>, vector<8x16xbf16>, vector<8x8xf32> -> vector<8x8xf32>
    "tpu.trace_stop"() : () -> ()
    %cst_24 = arith.constant 2.500000e-01 : f32
    %45 = vector.broadcast %cst_24 : f32 to vector<8x8xf32>
    %46 = arith.mulf %44, %45 : vector<8x8xf32>
    %47 = arith.addf %46, %21 : vector<8x8xf32>
    %cst_25 = arith.constant dense<0xFF800000> : vector<8xf32>
    %48 = vector.multi_reduction <maximumf>, %47, %cst_25 [1] : vector<8x8xf32> to vector<8xf32>
    %49 = vector.shape_cast %48 : vector<8xf32> to vector<8x1xf32>
    %50 = vector.broadcast %49 : vector<8x1xf32> to vector<8x8xf32>
    %51 = arith.subf %47, %50 : vector<8x8xf32>
    %52 = math.exp %51 : vector<8x8xf32>
    %cst_26 = arith.constant dense<0.000000e+00> : vector<8xf32>
    %53 = vector.multi_reduction <add>, %52, %cst_26 [1] : vector<8x8xf32> to vector<8xf32>
    %54 = vector.shape_cast %53 : vector<8xf32> to vector<8x1xf32>
    %55 = tpu.reciprocal %54 {approx = true} : vector<8x1xf32> -> vector<8x1xf32>
    %56 = vector.broadcast %55 : vector<8x1xf32> to vector<8x8xf32>
    %57 = arith.mulf %52, %56 : vector<8x8xf32>
    %58 = arith.truncf %57 : vector<8x8xf32> to vector<8x8xbf16>
    "tpu.trace_start"() <{level = 10 : i32, message = "qk,kd->qd"}> : () -> ()
    %cst_27 = arith.constant dense<0.000000e+00> : vector<8x16xf32>
    %59 = tpu.matmul %58, %43, %cst_27 {dimension_numbers = #tpu.dot_dimension_numbers<[1], [0], [0], [1], [0, 0, 1, 1], [], []>} : vector<8x8xbf16>, vector<8x16xbf16>, vector<8x16xf32> -> vector<8x16xf32>
    "tpu.trace_stop"() : () -> ()
    %60 = tpu.concatenate %40, %59 in 1 : vector<8x16xf32>, vector<8x16xf32> -> vector<8x32xf32>
    %61 = arith.truncf %60 : vector<8x32xf32> to vector<8x32xbf16>
    %c0_28 = arith.constant 0 : index
    %c0_29 = arith.constant 0 : index
    %62 = vector.load %arg9[%c0_28, %c0_29] : memref<32x32xbf16, #tpu.memory_space<vmem>>, vector<32x32xbf16>
    %cst_30 = arith.constant dense<0.000000e+00> : vector<8x32xf32>
    %63 = tpu.matmul %61, %62, %cst_30 {dimension_numbers = #tpu.dot_dimension_numbers<[1], [0], [0], [1], [0, 0, 1, 1], [], []>} : vector<8x32xbf16>, vector<32x32xbf16>, vector<8x32xf32> -> vector<8x32xf32>
    %c0_31 = arith.constant 0 : index
    %c0_32 = arith.constant 0 : index
    %64 = vector.load %arg10[%c0_31, %c0_32] : memref<1x32xf32, #tpu.memory_space<vmem>>, vector<1x32xf32>
    %65 = vector.broadcast %64 : vector<1x32xf32> to vector<8x32xf32>
    %66 = arith.addf %63, %65 : vector<8x32xf32>
    %67 = arith.addf %66, %0 : vector<8x32xf32>
    %cst_33 = arith.constant dense<0.000000e+00> : vector<8xf32>
    %68 = vector.multi_reduction <add>, %67, %cst_33 [1] : vector<8x32xf32> to vector<8xf32>
    %69 = vector.shape_cast %68 : vector<8xf32> to vector<8x1xf32>
    %cst_34 = arith.constant 3.200000e+01 : f32
    %70 = vector.broadcast %cst_34 : f32 to vector<8x1xf32>
    %71 = arith.divf %69, %70 : vector<8x1xf32>
    %72 = vector.broadcast %71 : vector<8x1xf32> to vector<8x32xf32>
    %73 = arith.subf %67, %72 : vector<8x32xf32>
    %74 = arith.mulf %73, %73 : vector<8x32xf32>
    %cst_35 = arith.constant dense<0.000000e+00> : vector<8xf32>
    %75 = vector.multi_reduction <add>, %74, %cst_35 [1] : vector<8x32xf32> to vector<8xf32>
    %76 = vector.shape_cast %75 : vector<8xf32> to vector<8x1xf32>
    %cst_36 = arith.constant 3.200000e+01 : f32
    %77 = vector.broadcast %cst_36 : f32 to vector<8x1xf32>
    %78 = arith.divf %76, %77 : vector<8x1xf32>
    %cst_37 = arith.constant 9.99999996E-13 : f32
    %79 = vector.broadcast %cst_37 : f32 to vector<8x1xf32>
    %80 = arith.addf %78, %79 : vector<8x1xf32>
    %81 = math.rsqrt %80 : vector<8x1xf32>
    %82 = vector.broadcast %81 : vector<8x1xf32> to vector<8x32xf32>
    %83 = arith.mulf %73, %82 : vector<8x32xf32>
    %c0_38 = arith.constant 0 : index
    %c0_39 = arith.constant 0 : index
    %84 = vector.load %arg11[%c0_38, %c0_39] : memref<1x32xf32, #tpu.memory_space<vmem>>, vector<1x32xf32>
    %85 = vector.broadcast %84 : vector<1x32xf32> to vector<8x32xf32>
    %86 = arith.mulf %85, %83 : vector<8x32xf32>
    %c0_40 = arith.constant 0 : index
    %c0_41 = arith.constant 0 : index
    %87 = vector.load %arg12[%c0_40, %c0_41] : memref<1x32xf32, #tpu.memory_space<vmem>>, vector<1x32xf32>
    %88 = vector.broadcast %87 : vector<1x32xf32> to vector<8x32xf32>
    %89 = arith.addf %86, %88 : vector<8x32xf32>
    %c0_42 = arith.constant 0 : index
    %c0_43 = arith.constant 0 : index
    %90 = vector.load %arg13[%c0_42, %c0_43] : memref<8x32xf32, #tpu.memory_space<vmem>>, vector<8x32xf32>
    tpu.vector_store %arg13[%c0_42, %c0_43], %89 {strides = array<i32>} : memref<8x32xf32, #tpu.memory_space<vmem>>, vector<8x32xf32>,
    return
  }
  func.func @transform_0(%arg0: i32) -> (i32, i32) {
    %c0_i32 = arith.constant 0 : i32
    %c0_i32_0 = arith.constant 0 : i32
    return %arg0, %c0_i32 : i32, i32
  }
  func.func @transform_1(%arg0: i32) -> (i32, i32, i32) {
    %c0_i32 = arith.constant 0 : i32
    %c0_i32_0 = arith.constant 0 : i32
    %c0_i32_1 = arith.constant 0 : i32
    return %arg0, %c0_i32, %c0_i32_0 : i32, i32, i32
  }
  func.func @transform_2(%arg0: i32) -> (i32, i32) {
    %c0_i32 = arith.constant 0 : i32
    %c0_i32_0 = arith.constant 0 : i32
    %c0_i32_1 = arith.constant 0 : i32
    return %c0_i32, %c0_i32_0 : i32, i32
  }
  func.func @transform_3(%arg0: i32) -> (i32, i32) {
    %c0_i32 = arith.constant 0 : i32
    %c0_i32_0 = arith.constant 0 : i32
    %c0_i32_1 = arith.constant 0 : i32
    return %c0_i32, %c0_i32_0 : i32, i32
  }
  func.func @transform_4(%arg0: i32) -> (i32, i32) {
    %c0_i32 = arith.constant 0 : i32
    %c0_i32_0 = arith.constant 0 : i32
    %c0_i32_1 = arith.constant 0 : i32
    return %c0_i32, %c0_i32_0 : i32, i32
  }
  func.func @transform_5(%arg0: i32) -> (i32, i32) {
    %c0_i32 = arith.constant 0 : i32
    %c0_i32_0 = arith.constant 0 : i32
    %c0_i32_1 = arith.constant 0 : i32
    return %c0_i32, %c0_i32_0 : i32, i32
  }
  func.func @transform_6(%arg0: i32) -> (i32, i32) {
    %c0_i32 = arith.constant 0 : i32
    %c0_i32_0 = arith.constant 0 : i32
    %c0_i32_1 = arith.constant 0 : i32
    return %c0_i32, %c0_i32_0 : i32, i32
  }
  func.func @transform_7(%arg0: i32) -> (i32, i32) {
    %c0_i32 = arith.constant 0 : i32
    %c0_i32_0 = arith.constant 0 : i32
    %c0_i32_1 = arith.constant 0 : i32
    return %c0_i32, %c0_i32_0 : i32, i32
  }
  func.func @transform_8(%arg0: i32) -> (i32, i32) {
    %c0_i32 = arith.constant 0 : i32
    %c0_i32_0 = arith.constant 0 : i32
    %c0_i32_1 = arith.constant 0 : i32
    return %c0_i32, %c0_i32_0 : i32, i32
  }
  func.func @transform_9(%arg0: i32) -> (i32, i32) {
    %c0_i32 = arith.constant 0 : i32
    %c0_i32_0 = arith.constant 0 : i32
    %c0_i32_1 = arith.constant 0 : i32
    return %c0_i32, %c0_i32_0 : i32, i32
  }
  func.func @transform_10(%arg0: i32) -> (i32, i32) {
    %c0_i32 = arith.constant 0 : i32
    %c0_i32_0 = arith.constant 0 : i32
    %c0_i32_1 = arith.constant 0 : i32
    return %c0_i32, %c0_i32_0 : i32, i32
  }
  func.func @transform_11(%arg0: i32) -> (i32, i32) {
    %c0_i32 = arith.constant 0 : i32
    %c0_i32_0 = arith.constant 0 : i32
    %c0_i32_1 = arith.constant 0 : i32
    return %c0_i32, %c0_i32_0 : i32, i32
  }
  func.func @transform_12(%arg0: i32) -> (i32, i32) {
    %c0_i32 = arith.constant 0 : i32
    %c0_i32_0 = arith.constant 0 : i32
    return %arg0, %c0_i32 : i32, i32
  }
}

</mosaic_0001>

<llo_original>
// kernel: tpu_custom_call.1
$region0: #{tpu_custom_call.1}
  #allocation0 [shape = 'u32[]', space=smem, size = 0x4, offset = 0x4, fixed_abs, tag = 'smem constant byte address 0x4 - core index']
  #allocation1 [shape = 'u32[144,128]{1,0:T(1,128)}', space=vmem, size = 0x12000, scoped, tag = 'internal scratch']
  %s0 = inlined_call_operand.hbm [shape: f32[16,32], index: 0, kind: input, shape index: {}]
  %s1 = inlined_call_operand.hbm [shape: f32[2,8,8], index: 1, kind: input, shape index: {}]
  %s2 = inlined_call_operand.hbm [shape: bf16[32,32], index: 2, kind: input, shape index: {}]
  %s3 = inlined_call_operand.vmem [shape: f32[1,32], index: 3, kind: input, shape index: {}]
  %s4 = inlined_call_operand.hbm [shape: bf16[32,32], index: 4, kind: input, shape index: {}]
  %s5 = inlined_call_operand.vmem [shape: f32[1,32], index: 5, kind: input, shape index: {}]
  %s6 = inlined_call_operand.vmem [shape: bf16[32,32], index: 6, kind: input, shape index: {}]
  %s7 = inlined_call_operand.vmem [shape: f32[1,32], index: 7, kind: input, shape index: {}]
  %s8 = inlined_call_operand.hbm [shape: bf16[32,32], index: 8, kind: input, shape index: {}]
  %s9 = inlined_call_operand.vmem [shape: f32[1,32], index: 9, kind: input, shape index: {}]
  %s10 = inlined_call_operand.vmem [shape: f32[1,32], index: 10, kind: input, shape index: {}]
  %s11 = inlined_call_operand.vmem [shape: f32[1,32], index: 11, kind: input, shape index: {}]
  %s12 = inlined_call_operand.hbm [shape: f32[16,32], index: 12, kind: output, shape index: {}]
  %s13 = sld [smem:[#allocation0]]
  $region101: #{tpu_custom_call.1} parent=0
    _
  %s15 = ssub.s32 1, %s13
  %s16 = scalar_select 0, %s15, %s13
  $region1: #{tpu_custom_call.1} parent=0
    #allocation2 [shape = 'u8[8192]{0}', space=vmem, size = 0x2000, scoped, tag = 'input window, operand 0']
    #allocation3 [shape = 's32[2]{0}', space=sflag, size = 0x8, scoped, tag = 'scoped memory for tpu_custom_call.1']
    #allocation4 [shape = 's32[2]{0}', space=sflag, size = 0x8, scoped, tag = 'scoped memory for tpu_custom_call.1']
    #allocation5 [shape = 'u8[8192]{0}', space=vmem, size = 0x2000, scoped, tag = 'input window, operand 1']
    #allocation6 [shape = 's32[2]{0}', space=sflag, size = 0x8, scoped, tag = 'scoped memory for tpu_custom_call.1']
    #allocation7 [shape = 'u8[8192]{0}', space=vmem, size = 0x2000, scoped, tag = 'input window, operand 2, single buffered']
    #allocation8 [shape = 'u8[8192]{0}', space=vmem, size = 0x2000, scoped, tag = 'input window, operand 4, single buffered']
    #allocation9 [shape = 's32[1]{0}', space=sflag, size = 0x4, scoped, tag = 'scoped memory for tpu_custom_call.1']
    #allocation10 [shape = 'u8[8192]{0}', space=vmem, size = 0x2000, scoped, tag = 'input window, operand 8, single buffered']
    #allocation11 [shape = 'u8[8192]{0}', space=vmem, size = 0x2000, scoped, tag = 'output window, operand 0']
    %17 = vsyncpa [#allocation3], 0
    %s18 = scalar_lea.sflag [#allocation3], 1
    %19 = vsyncpa %s18, 0
    %20 = vsyncpa [#allocation6], 0
    %s21 = scalar_lea.sflag [#allocation6], 1
    %22 = vsyncpa %s21, 0
    %23 = vsyncpa [#allocation9], 0
    %24 = vsyncpa [#allocation4], 0
    %s25 = scalar_lea.sflag [#allocation4], 1
    %26 = vsyncpa %s25, 0
    loop: start=0, step=1, limit=4
    $region2: #{tpu_custom_call.1} parent=1 // loop_pre_header
      _
    $region3: #{tpu_custom_call.1} parent=1 // loop_header
      %s28 = sphi 0, %s32
      %p29 = scmp.ge.s32.totalorder %s28, 4
      %s38 = sphi 0, %s40
      %s41 = sphi 0, %s38
      %s42 = sphi 0, %s41
      %s58 = sphi 0, %s42
      %s64 = sphi 0, %s66
      %s67 = sphi 0, %s64
      %s68 = sphi 0, %s67
      %s84 = sphi 0, %s68
      %s88 = sphi 0, %s88
      %s90 = sphi 0, %s88
      %s91 = sphi 0, %s90
      %s105 = sphi 0, %s91
      %s109 = sphi 0, %s109
      %s111 = sphi 0, %s109
      %s112 = sphi 0, %s111
      %s126 = sphi 0, %s112
      %s130 = sphi 0, %s130
      %s132 = sphi 0, %s130
      %s133 = sphi 0, %s132
      %s147 = sphi 0, %s133
      %s151 = sphi 0, %s151
      %s153 = sphi 0, %s151
      %s154 = sphi 0, %s153
      %s168 = sphi 0, %s154
      %s172 = sphi 0, %s172
      %s174 = sphi 0, %s172
      %s175 = sphi 0, %s174
      %s189 = sphi 0, %s175
      %s193 = sphi 0, %s193
      %s195 = sphi 0, %s193
      %s196 = sphi 0, %s195
      %s210 = sphi 0, %s196
      %s214 = sphi 0, %s214
      %s216 = sphi 0, %s214
      %s217 = sphi 0, %s216
      %s231 = sphi 0, %s217
      %s235 = sphi 0, %s235
      %s237 = sphi 0, %s235
      %s238 = sphi 0, %s237
      %s252 = sphi 0, %s238
      %s256 = sphi 0, %s256
      %s258 = sphi 0, %s256
      %s259 = sphi 0, %s258
      %s273 = sphi 0, %s259
      %s277 = sphi 0, %s277
      %s279 = sphi 0, %s277
      %s280 = sphi 0, %s279
      %s294 = sphi 0, %s280
      %s300 = sphi 0, %s302
      %s303 = sphi 0, %s300
      %s304 = sphi 0, %s303
      %s320 = sphi 0, %s304
    $region4: #{tpu_custom_call.1} parent=1 // loop_header_branch
      %31 = sbr.rel (%p29) target = $region8
    $region5: #{tpu_custom_call.1} parent=1 // loop_body
      %s33 = ssub.s32 %s28, 1
      %s34 = ssub.s32 %s28, 2
      %s35 = sadd.s32 %s28, 1
      %s36 = ssub.s32 %s28, %s35
      %p37 = scmp.eq.s32.totalorder %s36, 0
      %s39 = sadd.s32 %s38, 1
      %s40 = scalar_select %p37, %s38, %s39
      %p43 = pneg %p37
      %p44 = scmp.eq.s32.totalorder %s28, 1
      %p45 = por %p43, %p44
      %p46 = scmp.ne.s32.totalorder %s38, %s41
      %p47 = scmp.eq.s32.totalorder %s28, 0
      %p48 = por %p46, %p47
      %p49 = scmp.ne.s32.totalorder %s38, %s41
      %p50 = scmp.eq.s32.totalorder %s33, 1
      %p51 = por %p49, %p50
      %p52 = scmp.ne.s32.totalorder %s41, %s42
      %p53 = scmp.eq.s32.totalorder %s33, 0
      %p54 = por %p52, %p53
      %p55 = scmp.ne.s32.totalorder %s41, %s42
      %p56 = scmp.eq.s32.totalorder %s34, 1
      %p57 = por %p55, %p56
      %p59 = scmp.ne.s32.totalorder %s42, %s58
      %p60 = scmp.eq.s32.totalorder %s34, 0
      %p61 = por %p59, %p60
      %s62 = ssub.s32 %s28, %s35
      %p63 = scmp.eq.s32.totalorder %s62, 0
      %s65 = sadd.s32 %s64, 1
      %s66 = scalar_select %p63, %s64, %s65
      %p69 = pneg %p63
      %p70 = scmp.eq.s32.totalorder %s28, 1
      %p71 = por %p69, %p70
      %p72 = scmp.ne.s32.totalorder %s64, %s67
      %p73 = scmp.eq.s32.totalorder %s28, 0
      %p74 = por %p72, %p73
      %p75 = scmp.ne.s32.totalorder %s64, %s67
      %p76 = scmp.eq.s32.totalorder %s33, 1
      %p77 = por %p75, %p76
      %p78 = scmp.ne.s32.totalorder %s67, %s68
      %p79 = scmp.eq.s32.totalorder %s33, 0
      %p80 = por %p78, %p79
      %p81 = scmp.ne.s32.totalorder %s67, %s68
      %p82 = scmp.eq.s32.totalorder %s34, 1
      %p83 = por %p81, %p82
      %p85 = scmp.ne.s32.totalorder %s68, %s84
      %p86 = scmp.eq.s32.totalorder %s34, 0
      %p87 = por %p85, %p86
      %s89 = sadd.s32 %s88, 1
      %p92 = scmp.eq.s32.totalorder %s28, 1
      %p93 = scmp.ne.s32.totalorder %s88, %s90
      %p94 = scmp.eq.s32.totalorder %s28, 0
      %p95 = por %p93, %p94
      %p96 = scmp.ne.s32.totalorder %s88, %s90
      %p97 = scmp.eq.s32.totalorder %s33, 1
      %p98 = por %p96, %p97
      %p99 = scmp.ne.s32.totalorder %s90, %s91
      %p100 = scmp.eq.s32.totalorder %s33, 0
      %p101 = por %p99, %p100
      %p102 = scmp.ne.s32.totalorder %s90, %s91
      %p103 = scmp.eq.s32.totalorder %s34, 1
      %p104 = por %p102, %p103
      %p106 = scmp.ne.s32.totalorder %s91, %s105
      %p107 = scmp.eq.s32.totalorder %s34, 0
      %p108 = por %p106, %p107
      %s110 = sadd.s32 %s109, 1
      %p113 = scmp.eq.s32.totalorder %s28, 1
      %p114 = scmp.ne.s32.totalorder %s109, %s111
      %p115 = scmp.eq.s32.totalorder %s28, 0
      %p116 = por %p114, %p115
      %p117 = scmp.ne.s32.totalorder %s109, %s111
      %p118 = scmp.eq.s32.totalorder %s33, 1
      %p119 = por %p117, %p118
      %p120 = scmp.ne.s32.totalorder %s111, %s112
      %p121 = scmp.eq.s32.totalorder %s33, 0
      %p122 = por %p120, %p121
      %p123 = scmp.ne.s32.totalorder %s111, %s112
      %p124 = scmp.eq.s32.totalorder %s34, 1
      %p125 = por %p123, %p124
      %p127 = scmp.ne.s32.totalorder %s112, %s126
      %p128 = scmp.eq.s32.totalorder %s34, 0
      %p129 = por %p127, %p128
      %s131 = sadd.s32 %s130, 1
      %p134 = scmp.eq.s32.totalorder %s28, 1
      %p135 = scmp.ne.s32.totalorder %s130, %s132
      %p136 = scmp.eq.s32.totalorder %s28, 0
      %p137 = por %p135, %p136
      %p138 = scmp.ne.s32.totalorder %s130, %s132
      %p139 = scmp.eq.s32.totalorder %s33, 1
      %p140 = por %p138, %p139
      %p141 = scmp.ne.s32.totalorder %s132, %s133
      %p142 = scmp.eq.s32.totalorder %s33, 0
      %p143 = por %p141, %p142
      %p144 = scmp.ne.s32.totalorder %s132, %s133
      %p145 = scmp.eq.s32.totalorder %s34, 1
      %p146 = por %p144, %p145
      %p148 = scmp.ne.s32.totalorder %s133, %s147
      %p149 = scmp.eq.s32.totalorder %s34, 0
      %p150 = por %p148, %p149
      %s152 = sadd.s32 %s151, 1
      %p155 = scmp.eq.s32.totalorder %s28, 1
      %p156 = scmp.ne.s32.totalorder %s151, %s153
      %p157 = scmp.eq.s32.totalorder %s28, 0
      %p158 = por %p156, %p157
      %p159 = scmp.ne.s32.totalorder %s151, %s153
      %p160 = scmp.eq.s32.totalorder %s33, 1
      %p161 = por %p159, %p160
      %p162 = scmp.ne.s32.totalorder %s153, %s154
      %p163 = scmp.eq.s32.totalorder %s33, 0
      %p164 = por %p162, %p163
      %p165 = scmp.ne.s32.totalorder %s153, %s154
      %p166 = scmp.eq.s32.totalorder %s34, 1
      %p167 = por %p165, %p166
      %p169 = scmp.ne.s32.totalorder %s154, %s168
      %p170 = scmp.eq.s32.totalorder %s34, 0
      %p171 = por %p169, %p170
      %s173 = sadd.s32 %s172, 1
      %p176 = scmp.eq.s32.totalorder %s28, 1
      %p177 = scmp.ne.s32.totalorder %s172, %s174
      %p178 = scmp.eq.s32.totalorder %s28, 0
      %p179 = por %p177, %p178
      %p180 = scmp.ne.s32.totalorder %s172, %s174
      %p181 = scmp.eq.s32.totalorder %s33, 1
      %p182 = por %p180, %p181
      %p183 = scmp.ne.s32.totalorder %s174, %s175
      %p184 = scmp.eq.s32.totalorder %s33, 0
      %p185 = por %p183, %p184
      %p186 = scmp.ne.s32.totalorder %s174, %s175
      %p187 = scmp.eq.s32.totalorder %s34, 1
      %p188 = por %p186, %p187
      %p190 = scmp.ne.s32.totalorder %s175, %s189
      %p191 = scmp.eq.s32.totalorder %s34, 0
      %p192 = por %p190, %p191
      %s194 = sadd.s32 %s193, 1
      %p197 = scmp.eq.s32.totalorder %s28, 1
      %p198 = scmp.ne.s32.totalorder %s193, %s195
      %p199 = scmp.eq.s32.totalorder %s28, 0
      %p200 = por %p198, %p199
      %p201 = scmp.ne.s32.totalorder %s193, %s195
      %p202 = scmp.eq.s32.totalorder %s33, 1
      %p203 = por %p201, %p202
      %p204 = scmp.ne.s32.totalorder %s195, %s196
      %p205 = scmp.eq.s32.totalorder %s33, 0
      %p206 = por %p204, %p205
      %p207 = scmp.ne.s32.totalorder %s195, %s196
      %p208 = scmp.eq.s32.totalorder %s34, 1
      %p209 = por %p207, %p208
      %p211 = scmp.ne.s32.totalorder %s196, %s210
      %p212 = scmp.eq.s32.totalorder %s34, 0
      %p213 = por %p211, %p212
      %s215 = sadd.s32 %s214, 1
      %p218 = scmp.eq.s32.totalorder %s28, 1
      %p219 = scmp.ne.s32.totalorder %s214, %s216
      %p220 = scmp.eq.s32.totalorder %s28, 0
      %p221 = por %p219, %p220
      %p222 = scmp.ne.s32.totalorder %s214, %s216
      %p223 = scmp.eq.s32.totalorder %s33, 1
      %p224 = por %p222, %p223
      %p225 = scmp.ne.s32.totalorder %s216, %s217
      %p226 = scmp.eq.s32.totalorder %s33, 0
      %p227 = por %p225, %p226
      %p228 = scmp.ne.s32.totalorder %s216, %s217
      %p229 = scmp.eq.s32.totalorder %s34, 1
      %p230 = por %p228, %p229
      %p232 = scmp.ne.s32.totalorder %s217, %s231
      %p233 = scmp.eq.s32.totalorder %s34, 0
      %p234 = por %p232, %p233
      %s236 = sadd.s32 %s235, 1
      %p239 = scmp.eq.s32.totalorder %s28, 1
      %p240 = scmp.ne.s32.totalorder %s235, %s237
      %p241 = scmp.eq.s32.totalorder %s28, 0
      %p242 = por %p240, %p241
      %p243 = scmp.ne.s32.totalorder %s235, %s237
      %p244 = scmp.eq.s32.totalorder %s33, 1
      %p245 = por %p243, %p244
      %p246 = scmp.ne.s32.totalorder %s237, %s238
      %p247 = scmp.eq.s32.totalorder %s33, 0
      %p248 = por %p246, %p247
      %p249 = scmp.ne.s32.totalorder %s237, %s238
      %p250 = scmp.eq.s32.totalorder %s34, 1
      %p251 = por %p249, %p250
      %p253 = scmp.ne.s32.totalorder %s238, %s252
      %p254 = scmp.eq.s32.totalorder %s34, 0
      %p255 = por %p253, %p254
      %s257 = sadd.s32 %s256, 1
      %p260 = scmp.eq.s32.totalorder %s28, 1
      %p261 = scmp.ne.s32.totalorder %s256, %s258
      %p262 = scmp.eq.s32.totalorder %s28, 0
      %p263 = por %p261, %p262
      %p264 = scmp.ne.s32.totalorder %s256, %s258
      %p265 = scmp.eq.s32.totalorder %s33, 1
      %p266 = por %p264, %p265
      %p267 = scmp.ne.s32.totalorder %s258, %s259
      %p268 = scmp.eq.s32.totalorder %s33, 0
      %p269 = por %p267, %p268
      %p270 = scmp.ne.s32.totalorder %s258, %s259
      %p271 = scmp.eq.s32.totalorder %s34, 1
      %p272 = por %p270, %p271
      %p274 = scmp.ne.s32.totalorder %s259, %s273
      %p275 = scmp.eq.s32.totalorder %s34, 0
      %p276 = por %p274, %p275
      %s278 = sadd.s32 %s277, 1
      %p281 = scmp.eq.s32.totalorder %s28, 1
      %p282 = scmp.ne.s32.totalorder %s277, %s279
      %p283 = scmp.eq.s32.totalorder %s28, 0
      %p284 = por %p282, %p283
      %p285 = scmp.ne.s32.totalorder %s277, %s279
      %p286 = scmp.eq.s32.totalorder %s33, 1
      %p287 = por %p285, %p286
      %p288 = scmp.ne.s32.totalorder %s279, %s280
      %p289 = scmp.eq.s32.totalorder %s33, 0
      %p290 = por %p288, %p289
      %p291 = scmp.ne.s32.totalorder %s279, %s280
      %p292 = scmp.eq.s32.totalorder %s34, 1
      %p293 = por %p291, %p292
      %p295 = scmp.ne.s32.totalorder %s280, %s294
      %p296 = scmp.eq.s32.totalorder %s34, 0
      %p297 = por %p295, %p296
      %s298 = ssub.s32 %s28, %s35
      %p299 = scmp.eq.s32.totalorder %s298, 0
      %s301 = sadd.s32 %s300, 1
      %s302 = scalar_select %p299, %s300, %s301
      %p305 = pneg %p299
      %p306 = scmp.eq.s32.totalorder %s28, 1
      %p307 = por %p305, %p306
      %p308 = scmp.ne.s32.totalorder %s300, %s303
      %p309 = scmp.eq.s32.totalorder %s28, 0
      %p310 = por %p308, %p309
      %p311 = scmp.ne.s32.totalorder %s300, %s303
      %p312 = scmp.eq.s32.totalorder %s33, 1
      %p313 = por %p311, %p312
      %p314 = scmp.ne.s32.totalorder %s303, %s304
      %p315 = scmp.eq.s32.totalorder %s33, 0
      %p316 = por %p314, %p315
      %p317 = scmp.ne.s32.totalorder %s303, %s304
      %p318 = scmp.eq.s32.totalorder %s34, 1
      %p319 = por %p317, %p318
      %p321 = scmp.ne.s32.totalorder %s304, %s320
      %p322 = scmp.eq.s32.totalorder %s34, 0
      %p323 = por %p321, %p322
      %p324 = scmp.le.s32.totalorder 1, %s28
      %p325 = scmp.lt.s32.totalorder %s28, 3
      %p326 = pnand %p324, %p325
      %p327 = pneg %p326
      // Predicated region
      $region9: #{tpu_custom_call.1} parent=5 // pred_check
        _
      $region10: #{tpu_custom_call.1} parent=5 // pred_check_branch
        %329 = sbr.rel (%p326) target = $region12
      $region11: #{tpu_custom_call.1} parent=5 // pred_region
        %s330 = ssub.s32 %s28, 1
        // Predicated region
        $region13: #{tpu_custom_call.1} parent=11 // pred_check
          %p331 = pneg %p101
        $region14: #{tpu_custom_call.1} parent=11 // pred_check_branch
          %333 = sbr.rel (%p331) target = $region16
        $region15: #{tpu_custom_call.1} parent=11 // pred_region
          %s335 = ssub.s32 256, 256
          %336 = vsyncadd [#allocation6], %s335
          %s337 = sshll.u32 [#allocation7], 4
          %s338 = int_to_ptr.vmem [resolvable:$true] %s337
          %343 = dma.hbm_to_vmem [thread:$0]  %s2, 256, %s338, [#allocation6], 64, 64, 4
        $region16: #{tpu_custom_call.1} parent=11 // pred_fallthru
          _
        // Predicated region
        $region17: #{tpu_custom_call.1} parent=11 // pred_check
          %p344 = pneg %p122
        $region18: #{tpu_custom_call.1} parent=11 // pred_check_branch
          %346 = sbr.rel (%p344) target = $region20
        $region19: #{tpu_custom_call.1} parent=11 // pred_region
          _
        $region20: #{tpu_custom_call.1} parent=11 // pred_fallthru
          _
        // Predicated region
        $region21: #{tpu_custom_call.1} parent=11 // pred_check
          %p347 = pneg %p143
        $region22: #{tpu_custom_call.1} parent=11 // pred_check_branch
          %349 = sbr.rel (%p347) target = $region24
        $region23: #{tpu_custom_call.1} parent=11 // pred_region
          %s351 = ssub.s32 256, 256
          %352 = vsyncadd [#allocation9], %s351
          %s353 = sshll.u32 [#allocation8], 4
          %s354 = int_to_ptr.vmem [resolvable:$true] %s353
          %359 = dma.hbm_to_vmem [thread:$0]  %s4, 256, %s354, [#allocation9], 64, 64, 4
        $region24: #{tpu_custom_call.1} parent=11 // pred_fallthru
          _
        // Predicated region
        $region25: #{tpu_custom_call.1} parent=11 // pred_check
          %p360 = pneg %p164
        $region26: #{tpu_custom_call.1} parent=11 // pred_check_branch
          %362 = sbr.rel (%p360) target = $region28
        $region27: #{tpu_custom_call.1} parent=11 // pred_region
          _
        $region28: #{tpu_custom_call.1} parent=11 // pred_fallthru
          _
        // Predicated region
        $region29: #{tpu_custom_call.1} parent=11 // pred_check
          %p363 = pneg %p185
        $region30: #{tpu_custom_call.1} parent=11 // pred_check_branch
          %365 = sbr.rel (%p363) target = $region32
        $region31: #{tpu_custom_call.1} parent=11 // pred_region
          _
        $region32: #{tpu_custom_call.1} parent=11 // pred_fallthru
          _
        // Predicated region
        $region33: #{tpu_custom_call.1} parent=11 // pred_check
          %p366 = pneg %p206
        $region34: #{tpu_custom_call.1} parent=11 // pred_check_branch
          %368 = sbr.rel (%p366) target = $region36
        $region35: #{tpu_custom_call.1} parent=11 // pred_region
          _
        $region36: #{tpu_custom_call.1} parent=11 // pred_fallthru
          _
        // Predicated region
        $region37: #{tpu_custom_call.1} parent=11 // pred_check
          %p369 = pneg %p227
        $region38: #{tpu_custom_call.1} parent=11 // pred_check_branch
          %371 = sbr.rel (%p369) target = $region40
        $region39: #{tpu_custom_call.1} parent=11 // pred_region
          %s373 = ssub.s32 256, 256
          %374 = vsyncadd [#allocation9], %s373
          %s375 = sshll.u32 [#allocation10], 4
          %s376 = int_to_ptr.vmem [resolvable:$true] %s375
          %381 = dma.hbm_to_vmem [thread:$0]  %s8, 256, %s376, [#allocation9], 64, 64, 4
        $region40: #{tpu_custom_call.1} parent=11 // pred_fallthru
          _
        // Predicated region
        $region41: #{tpu_custom_call.1} parent=11 // pred_check
          %p382 = pneg %p248
        $region42: #{tpu_custom_call.1} parent=11 // pred_check_branch
          %384 = sbr.rel (%p382) target = $region44
        $region43: #{tpu_custom_call.1} parent=11 // pred_region
          _
        $region44: #{tpu_custom_call.1} parent=11 // pred_fallthru
          _
        // Predicated region
        $region45: #{tpu_custom_call.1} parent=11 // pred_check
          %p385 = pneg %p269
        $region46: #{tpu_custom_call.1} parent=11 // pred_check_branch
          %387 = sbr.rel (%p385) target = $region48
        $region47: #{tpu_custom_call.1} parent=11 // pred_region
          _
        $region48: #{tpu_custom_call.1} parent=11 // pred_fallthru
          _
        // Predicated region
        $region49: #{tpu_custom_call.1} parent=11 // pred_check
          %p388 = pneg %p290
        $region50: #{tpu_custom_call.1} parent=11 // pred_check_branch
          %390 = sbr.rel (%p388) target = $region52
        $region51: #{tpu_custom_call.1} parent=11 // pred_region
          _
        $region52: #{tpu_custom_call.1} parent=11 // pred_fallthru
          _
      $region12: #{tpu_custom_call.1} parent=5 // pred_fallthru
        _
      %p391 = scmp.lt.s32.totalorder %s28, 2
      // Predicated region
      $region53: #{tpu_custom_call.1} parent=5 // pred_check
        %p392 = pneg %p391
      $region54: #{tpu_custom_call.1} parent=5 // pred_check_branch
        %394 = sbr.rel (%p392) target = $region56
      $region55: #{tpu_custom_call.1} parent=5 // pred_region
        // Predicated region
        $region57: #{tpu_custom_call.1} parent=55 // pred_check
          %p395 = pneg %p48
        $region58: #{tpu_custom_call.1} parent=55 // pred_check_branch
          %397 = sbr.rel (%p395) target = $region60
        $region59: #{tpu_custom_call.1} parent=55 // pred_region
          %s398 = sand.u32 %s38, 1
          %s399 = scalar_lea.sflag [#allocation3], %s398
          %s400 = sand.u32 %s38, 1
          %s401 = smul.addr %s400, 8
          %s402 = scalar_lea.vmem [#allocation2], %s401
          %s404 = ssub.s32 128, 128
          %405 = vsyncadd %s399, %s404
          %s406 = smul.addr %s28, 128
          %s407 = scalar_lea.hbm %s0, %s406
          %s409 = sshll.u32 %s402, 4
          %s410 = int_to_ptr.vmem [resolvable:$true] %s409
          %412 = dma.hbm_to_vmem [thread:$0]  %s407, 128, %s410, %s399
        $region60: #{tpu_custom_call.1} parent=55 // pred_fallthru
          _
        // Predicated region
        $region61: #{tpu_custom_call.1} parent=55 // pred_check
          %p413 = pneg %p74
        $region62: #{tpu_custom_call.1} parent=55 // pred_check_branch
          %415 = sbr.rel (%p413) target = $region64
        $region63: #{tpu_custom_call.1} parent=55 // pred_region
          %s416 = sand.u32 %s28, 1
          %s417 = scalar_lea.sflag [#allocation6], %s416
          %s418 = sand.u32 %s64, 1
          %s419 = smul.addr %s418, 8
          %s420 = scalar_lea.vmem [#allocation5], %s419
          %s422 = ssub.s32 128, 128
          %423 = vsyncadd %s417, %s422
          %s424 = smul.addr %s28, 128
          %s425 = scalar_lea.hbm %s1, %s424
          %s427 = sshll.u32 %s420, 4
          %s428 = int_to_ptr.vmem [resolvable:$true] %s427
          %430 = dma.hbm_to_vmem [thread:$0]  %s425, 128, %s428, %s417
        $region64: #{tpu_custom_call.1} parent=55 // pred_fallthru
          _
      $region56: #{tpu_custom_call.1} parent=5 // pred_fallthru
        _
      %p431 = scmp.le.s32.totalorder 1, %s28
      %p432 = scmp.lt.s32.totalorder %s28, 3
      %p433 = pnand %p431, %p432
      %p434 = pneg %p433
      // Predicated region
      $region65: #{tpu_custom_call.1} parent=5 // pred_check
        _
      $region66: #{tpu_custom_call.1} parent=5 // pred_check_branch
        %436 = sbr.rel (%p433) target = $region68
      $region67: #{tpu_custom_call.1} parent=5 // pred_region
        %s437 = ssub.s32 %s28, 1
        %s438 = sand.u32 %s41, 1
        %s439 = scalar_lea.sflag [#allocation3], %s438
        %s440 = sand.u32 %s41, 1
        %s441 = smul.addr %s440, 8
        %s442 = scalar_lea.vmem [#allocation2], %s441
        // Predicated region
        $region69: #{tpu_custom_call.1} parent=67 // pred_check
          %p443 = pneg %p54
        $region70: #{tpu_custom_call.1} parent=67 // pred_check_branch
          %445 = sbr.rel (%p443) target = $region72
        $region71: #{tpu_custom_call.1} parent=67 // pred_region
          %446 = dma.done %s439, 128
        $region72: #{tpu_custom_call.1} parent=67 // pred_fallthru
          _
        %s447 = sand.u32 %s33, 1
        %s448 = scalar_lea.sflag [#allocation6], %s447
        %s449 = sand.u32 %s67, 1
        %s450 = smul.addr %s449, 8
        %s451 = scalar_lea.vmem [#allocation5], %s450
        // Predicated region
        $region73: #{tpu_custom_call.1} parent=67 // pred_check
          %p452 = pneg %p80
        $region74: #{tpu_custom_call.1} parent=67 // pred_check_branch
          %454 = sbr.rel (%p452) target = $region76
        $region75: #{tpu_custom_call.1} parent=67 // pred_region
          %455 = dma.done %s448, 128
        $region76: #{tpu_custom_call.1} parent=67 // pred_fallthru
          _
        // Predicated region
        $region77: #{tpu_custom_call.1} parent=67 // pred_check
          %p456 = pneg %p101
        $region78: #{tpu_custom_call.1} parent=67 // pred_check_branch
          %458 = sbr.rel (%p456) target = $region80
        $region79: #{tpu_custom_call.1} parent=67 // pred_region
          %459 = dma.done [#allocation6], 256
        $region80: #{tpu_custom_call.1} parent=67 // pred_fallthru
          _
        // Predicated region
        $region81: #{tpu_custom_call.1} parent=67 // pred_check
          %p460 = pneg %p143
        $region82: #{tpu_custom_call.1} parent=67 // pred_check_branch
          %462 = sbr.rel (%p460) target = $region84
        $region83: #{tpu_custom_call.1} parent=67 // pred_region
          %463 = dma.done [#allocation9], 256
        $region84: #{tpu_custom_call.1} parent=67 // pred_fallthru
          _
        // Predicated region
        $region85: #{tpu_custom_call.1} parent=67 // pred_check
          %p464 = pneg %p227
        $region86: #{tpu_custom_call.1} parent=67 // pred_check_branch
          %466 = sbr.rel (%p464) target = $region88
        $region87: #{tpu_custom_call.1} parent=67 // pred_region
          %467 = dma.done [#allocation9], 256
        $region88: #{tpu_custom_call.1} parent=67 // pred_fallthru
          _
        %s468 = sand.u32 %s41, 1
        %s469 = scalar_lea.sflag [#allocation3], %s468
        %s470 = sand.u32 %s41, 1
        %s471 = smul.addr %s470, 8
        %s472 = scalar_lea.vmem [#allocation2], %s471
        %p473 = pneg %p54
        %p474 = pneg %p51
        %s475 = sand.u32 %s33, 1
        %s476 = scalar_lea.sflag [#allocation6], %s475
        %s477 = sand.u32 %s67, 1
        %s478 = smul.addr %s477, 8
        %s479 = scalar_lea.vmem [#allocation5], %s478
        %p480 = pneg %p80
        %p481 = pneg %p77
        %p482 = pneg %p101
        %p483 = pneg %p98
        %p484 = pneg %p122
        %p485 = pneg %p119
        %p486 = pneg %p143
        %p487 = pneg %p140
        %p488 = pneg %p164
        %p489 = pneg %p161
        %p490 = pneg %p185
        %p491 = pneg %p182
        %p492 = pneg %p206
        %p493 = pneg %p203
        %p494 = pneg %p227
        %p495 = pneg %p224
        %p496 = pneg %p248
        %p497 = pneg %p245
        %p498 = pneg %p269
        %p499 = pneg %p266
        %p500 = pneg %p290
        %p501 = pneg %p287
        %p502 = pneg %p316
        %p503 = pneg %p313
        %s504 = sand.u32 %s303, 1
        %s505 = scalar_lea.sflag [#allocation4], %s504
        %s506 = sand.u32 %s303, 1
        %s507 = smul.addr %s506, 8
        %s508 = scalar_lea.vmem [#allocation11], %s507
        %v510 = vld [vmem:[%s442] sm:$0xff]
        %v511 = vpack.c.bf16 %v510, %v510
        %v512 = vld [vmem:[#allocation7] sm:$0xf]
        %v513 = vld [vmem:[#allocation7 + $0x4] sm:$0xf]
        %v514 = vld [vmem:[#allocation7 + $0x8] sm:$0xf]
        %v515 = vld [vmem:[#allocation7 + $0xc] sm:$0xf]
        %v516 = vld [vmem:[%s3] sm:$0x1]
        %v518 = vlaneseq
        %v519 = vshrl.u32 %v518, 7
        %v520 = vsub.s32 0, %v519
        %v521 = vrot.slane %v516, %v520
        %v527 = vunpack.c.l.b16 %v512
        %v528 = vunpack.c.l.b16 %v513
        %v529 = vunpack.c.l.b16 %v514
        %v530 = vunpack.c.l.b16 %v515
        %v531 = vpack.c.b16 %v528, %v527
        %v532 = vpack.c.b16 %v530, %v529
        %vm535 = vcmask 261120
        %v537 = vsel %vm535, %v511, 0
        %539 = vmatprep.subr.bf16.mxu0 0
        %540 = vmatpush1.bf16.msra.mxu0 %v531
        %541 = vmatprep.subr.bf16.mxu0 0
        %542 = vmatpush1.bf16.msra.mxu0 %v532
        %543 = vmatprep.subr.bf16.mxu0 0
        %544 = vmatpush1.bf16.msra.mxu0 0
        %545 = vmatprep.subr.bf16.mxu0 0
        %546 = vmatpush1.bf16.msra.mxu0 0
        %547 = vmatprep.subr.bf16.mxu0 0
        %548 = vmatpush1.bf16.msra.mxu0 0
        %549 = vmatprep.subr.bf16.mxu0 0
        %550 = vmatpush1.bf16.msra.mxu0 0
        %551 = vmatprep.subr.bf16.mxu0 0
        %552 = vmatpush1.bf16.msra.mxu0 0
        %553 = vmatprep.subr.bf16.mxu0 0
        %554 = vmatpush1.bf16.msra.mxu0 0
        %555 = vmatprep.subr.bf16.mxu0 0
        %556 = vmatpush1.bf16.msra.mxu0 0
        %557 = vmatprep.subr.bf16.mxu0 0
        %558 = vmatpush1.bf16.msra.mxu0 0
        %559 = vmatprep.subr.bf16.mxu0 0
        %560 = vmatpush1.bf16.msra.mxu0 0
        %561 = vmatprep.subr.bf16.mxu0 0
        %562 = vmatpush1.bf16.msra.mxu0 0
        %563 = vmatprep.subr.bf16.mxu0 0
        %564 = vmatpush1.bf16.msra.mxu0 0
        %565 = vmatprep.subr.bf16.mxu0 0
        %566 = vmatpush1.bf16.msra.mxu0 0
        %567 = vmatprep.subr.bf16.mxu0 0
        %568 = vmatpush1.bf16.msra.mxu0 0
        %569 = vmatprep.subr.bf16.mxu0 0
        %570 = vmatpush1.bf16.msra.mxu0 0
        %571 = vmatprep.mubr.bf16.mxu0 0
        %572 = vmatmul.mubr.bf16.gmra.mrb[0].mxu0 %v537
        %v573 = vpop.f32.mrb[0].mxu0
        %v574 = vadd.f32 %v521, %v573
        %v575 = vpop.f32.mrb[0].mxu0
        %v576 = vpop.f32.mrb[0].mxu0
        %v577 = vpop.f32.mrb[0].mxu0
        %578 = vdwg.mxu0
        %v579 = vld [vmem:[#allocation8] sm:$0xf]
        %v580 = vld [vmem:[#allocation8 + $0x4] sm:$0xf]
        %v581 = vld [vmem:[#allocation8 + $0x8] sm:$0xf]
        %v582 = vld [vmem:[#allocation8 + $0xc] sm:$0xf]
        %v583 = vld [vmem:[%s5] sm:$0x1]
        %v585 = vlaneseq
        %v586 = vshrl.u32 %v585, 7
        %v587 = vsub.s32 0, %v586
        %v588 = vrot.slane %v583, %v587
        %v594 = vunpack.c.l.b16 %v579
        %v595 = vunpack.c.l.b16 %v580
        %v596 = vunpack.c.l.b16 %v581
        %v597 = vunpack.c.l.b16 %v582
        %v598 = vpack.c.b16 %v595, %v594
        %v599 = vpack.c.b16 %v597, %v596
        %602 = vmatprep.subr.bf16.mxu0 0
        %603 = vmatpush1.bf16.msra.mxu0 %v598
        %604 = vmatprep.subr.bf16.mxu0 0
        %605 = vmatpush1.bf16.msra.mxu0 %v599
        %606 = vmatprep.subr.bf16.mxu0 0
        %607 = vmatpush1.bf16.msra.mxu0 0
        %608 = vmatprep.subr.bf16.mxu0 0
        %609 = vmatpush1.bf16.msra.mxu0 0
        %610 = vmatprep.subr.bf16.mxu0 0
        %611 = vmatpush1.bf16.msra.mxu0 0
        %612 = vmatprep.subr.bf16.mxu0 0
        %613 = vmatpush1.bf16.msra.mxu0 0
        %614 = vmatprep.subr.bf16.mxu0 0
        %615 = vmatpush1.bf16.msra.mxu0 0
        %616 = vmatprep.subr.bf16.mxu0 0
        %617 = vmatpush1.bf16.msra.mxu0 0
        %618 = vmatprep.subr.bf16.mxu0 0
        %619 = vmatpush1.bf16.msra.mxu0 0
        %620 = vmatprep.subr.bf16.mxu0 0
        %621 = vmatpush1.bf16.msra.mxu0 0
        %622 = vmatprep.subr.bf16.mxu0 0
        %623 = vmatpush1.bf16.msra.mxu0 0
        %624 = vmatprep.subr.bf16.mxu0 0
        %625 = vmatpush1.bf16.msra.mxu0 0
        %626 = vmatprep.subr.bf16.mxu0 0
        %627 = vmatpush1.bf16.msra.mxu0 0
        %628 = vmatprep.subr.bf16.mxu0 0
        %629 = vmatpush1.bf16.msra.mxu0 0
        %630 = vmatprep.subr.bf16.mxu0 0
        %631 = vmatpush1.bf16.msra.mxu0 0
        %632 = vmatprep.subr.bf16.mxu0 0
        %633 = vmatpush1.bf16.msra.mxu0 0
        %634 = vmatprep.mubr.bf16.mxu0 0
        %635 = vmatmul.mubr.bf16.gmra.mrb[0].mxu0 %v537
        %v636 = vpop.f32.mrb[0].mxu0
        %v637 = vadd.f32 %v588, %v636
        %v638 = vpop.f32.mrb[0].mxu0
        %v639 = vpop.f32.mrb[0].mxu0
        %v640 = vpop.f32.mrb[0].mxu0
        %641 = vdwg.mxu0
        %v642 = vld [vmem:[%s6] sm:$0xf]
        %v643 = vld [vmem:[%s6 + $0x4] sm:$0xf]
        %v644 = vld [vmem:[%s6 + $0x8] sm:$0xf]
        %v645 = vld [vmem:[%s6 + $0xc] sm:$0xf]
        %v646 = vld [vmem:[%s7] sm:$0x1]
        %v648 = vlaneseq
        %v649 = vshrl.u32 %v648, 7
        %v650 = vsub.s32 0, %v649
        %v651 = vrot.slane %v646, %v650
        %v657 = vunpack.c.l.b16 %v642
        %v658 = vunpack.c.l.b16 %v643
        %v659 = vunpack.c.l.b16 %v644
        %v660 = vunpack.c.l.b16 %v645
        %v661 = vpack.c.b16 %v658, %v657
        %v662 = vpack.c.b16 %v660, %v659
        %665 = vmatprep.subr.bf16.mxu0 0
        %666 = vmatpush1.bf16.msra.mxu0 %v661
        %667 = vmatprep.subr.bf16.mxu0 0
        %668 = vmatpush1.bf16.msra.mxu0 %v662
        %669 = vmatprep.subr.bf16.mxu0 0
        %670 = vmatpush1.bf16.msra.mxu0 0
        %671 = vmatprep.subr.bf16.mxu0 0
        %672 = vmatpush1.bf16.msra.mxu0 0
        %673 = vmatprep.subr.bf16.mxu0 0
        %674 = vmatpush1.bf16.msra.mxu0 0
        %675 = vmatprep.subr.bf16.mxu0 0
        %676 = vmatpush1.bf16.msra.mxu0 0
        %677 = vmatprep.subr.bf16.mxu0 0
        %678 = vmatpush1.bf16.msra.mxu0 0
        %679 = vmatprep.subr.bf16.mxu0 0
        %680 = vmatpush1.bf16.msra.mxu0 0
        %681 = vmatprep.subr.bf16.mxu0 0
        %682 = vmatpush1.bf16.msra.mxu0 0
        %683 = vmatprep.subr.bf16.mxu0 0
        %684 = vmatpush1.bf16.msra.mxu0 0
        %685 = vmatprep.subr.bf16.mxu0 0
        %686 = vmatpush1.bf16.msra.mxu0 0
        %687 = vmatprep.subr.bf16.mxu0 0
        %688 = vmatpush1.bf16.msra.mxu0 0
        %689 = vmatprep.subr.bf16.mxu0 0
        %690 = vmatpush1.bf16.msra.mxu0 0
        %691 = vmatprep.subr.bf16.mxu0 0
        %692 = vmatpush1.bf16.msra.mxu0 0
        %693 = vmatprep.subr.bf16.mxu0 0
        %694 = vmatpush1.bf16.msra.mxu0 0
        %695 = vmatprep.subr.bf16.mxu0 0
        %696 = vmatpush1.bf16.msra.mxu0 0
        %697 = vmatprep.mubr.bf16.mxu0 0
        %698 = vmatmul.mubr.bf16.gmra.mrb[0].mxu0 %v537
        %v699 = vpop.f32.mrb[0].mxu0
        %v700 = vadd.f32 %v651, %v699
        %v701 = vpop.f32.mrb[0].mxu0
        %v702 = vpop.f32.mrb[0].mxu0
        %v703 = vpop.f32.mrb[0].mxu0
        %704 = vdwg.mxu0
        %v705 = vpack.c.bf16 %v574, %v574
        %v706 = vpack.c.bf16 %v637, %v637
        %v707 = vpack.c.bf16 %v700, %v700
        %v708 = vld [vmem:[%s451] sm:$0xff]
        %vm709 = vcmask 130048
        %v711 = vsel %vm709, %v705, 0
        %v714 = vsel %vm709, %v706, 0
        %716 = vmatprep.subr.bf16.mxu0 0
        %717 = vmatpush1.bf16.xpose.msra.mxu0 %v714
        %718 = vmatprep.subr.bf16.mxu0 0
        %719 = vmatpush1.bf16.xpose.msra.mxu0 0
        %720 = vmatprep.subr.bf16.mxu0 0
        %721 = vmatpush1.bf16.xpose.msra.mxu0 0
        %722 = vmatprep.subr.bf16.mxu0 0
        %723 = vmatpush1.bf16.xpose.msra.mxu0 0
        %724 = vmatprep.subr.bf16.mxu0 0
        %725 = vmatpush1.bf16.xpose.msra.mxu0 0
        %726 = vmatprep.subr.bf16.mxu0 0
        %727 = vmatpush1.bf16.xpose.msra.mxu0 0
        %728 = vmatprep.subr.bf16.mxu0 0
        %729 = vmatpush1.bf16.xpose.msra.mxu0 0
        %730 = vmatprep.subr.bf16.mxu0 0
        %731 = vmatpush1.bf16.xpose.msra.mxu0 0
        %732 = vmatprep.subr.bf16.mxu0 0
        %733 = vmatpush1.bf16.xpose.msra.mxu0 0
        %734 = vmatprep.subr.bf16.mxu0 0
        %735 = vmatpush1.bf16.xpose.msra.mxu0 0
        %736 = vmatprep.subr.bf16.mxu0 0
        %737 = vmatpush1.bf16.xpose.msra.mxu0 0
        %738 = vmatprep.subr.bf16.mxu0 0
        %739 = vmatpush1.bf16.xpose.msra.mxu0 0
        %740 = vmatprep.subr.bf16.mxu0 0
        %741 = vmatpush1.bf16.xpose.msra.mxu0 0
        %742 = vmatprep.subr.bf16.mxu0 0
        %743 = vmatpush1.bf16.xpose.msra.mxu0 0
        %744 = vmatprep.subr.bf16.mxu0 0
        %745 = vmatpush1.bf16.xpose.msra.mxu0 0
        %746 = vmatprep.subr.bf16.mxu0 0
        %747 = vmatpush1.bf16.xpose.msra.mxu0 0
        %748 = vmatprep.mubr.bf16.mxu0 0
        %749 = vmatmul.mubr.bf16.gmra.mrb[0].mxu0 %v711
        %v750 = vpop.f32.mrb[0].mxu0
        %v751 = vadd.f32 0.0, %v750
        %v752 = vpop.f32.mrb[0].mxu0
        %v753 = vpop.f32.mrb[0].mxu0
        %v754 = vpop.f32.mrb[0].mxu0
        %755 = vdwg.mxu0
        %v756 = vmul.f32 %v751, 0.25
        %v757 = vadd.f32 %v756, %v708
        %vm758 = vcmask 64512
        %v759 = vsel %vm758, %v757, -inf
        %760 = vmax.xlane.f32.xlu0 %v759
        %v761 = vpop.xlane.xlu0 %760
        %v762 = vsub.f32 %v757, %v761
        %v763 = vmul.f32 %v762, 1.442695
        %v764 = vpow.pop %v763
        %v765 = vsel %vm758, %v764, 0.0
        %766 = vadd.xlane.f32.xlu0 %v765
        %v767 = vpop.xlane.xlu0 %766
        %v768 = vrcp.pop %v767
        %v769 = vmul.f32 %v764, %v768
        %v770 = vpack.c.bf16 %v769, %v769
        %v772 = vsel %vm758, %v770, 0
        %vm774 = vcmask 1043456
        %v776 = vsel %vm774, %v707, 0
        %778 = vmatprep.subr.bf16.mxu0 0
        %779 = vmatpush1.bf16.msra.mxu0 %v776
        %780 = vmatprep.subr.bf16.mxu0 0
        %781 = vmatpush1.bf16.msra.mxu0 0
        %782 = vmatprep.subr.bf16.mxu0 0
        %783 = vmatpush1.bf16.msra.mxu0 0
        %784 = vmatprep.subr.bf16.mxu0 0
        %785 = vmatpush1.bf16.msra.mxu0 0
        %786 = vmatprep.subr.bf16.mxu0 0
        %787 = vmatpush1.bf16.msra.mxu0 0
        %788 = vmatprep.subr.bf16.mxu0 0
        %789 = vmatpush1.bf16.msra.mxu0 0
        %790 = vmatprep.subr.bf16.mxu0 0
        %791 = vmatpush1.bf16.msra.mxu0 0
        %792 = vmatprep.subr.bf16.mxu0 0
        %793 = vmatpush1.bf16.msra.mxu0 0
        %794 = vmatprep.subr.bf16.mxu0 0
        %795 = vmatpush1.bf16.msra.mxu0 0
        %796 = vmatprep.subr.bf16.mxu0 0
        %797 = vmatpush1.bf16.msra.mxu0 0
        %798 = vmatprep.subr.bf16.mxu0 0
        %799 = vmatpush1.bf16.msra.mxu0 0
        %800 = vmatprep.subr.bf16.mxu0 0
        %801 = vmatpush1.bf16.msra.mxu0 0
        %802 = vmatprep.subr.bf16.mxu0 0
        %803 = vmatpush1.bf16.msra.mxu0 0
        %804 = vmatprep.subr.bf16.mxu0 0
        %805 = vmatpush1.bf16.msra.mxu0 0
        %806 = vmatprep.subr.bf16.mxu0 0
        %807 = vmatpush1.bf16.msra.mxu0 0
        %808 = vmatprep.subr.bf16.mxu0 0
        %809 = vmatpush1.bf16.msra.mxu0 0
        %810 = vmatprep.mubr.bf16.mxu0 0
        %811 = vmatmul.mubr.bf16.gmra.mrb[0].mxu0 %v772
        %v812 = vpop.f32.mrb[0].mxu0
        %v813 = vadd.f32 0.0, %v812
        %v814 = vpop.f32.mrb[0].mxu0
        %v815 = vpop.f32.mrb[0].mxu0
        %v816 = vpop.f32.mrb[0].mxu0
        %817 = vdwg.mxu0
        %819 = vrot.lane.b32.xlu0 %v705, 112
        %v820 = vpop.permute.xlu0 %819
        %822 = vrot.lane.b32.xlu0 %v706, 112
        %v823 = vpop.permute.xlu0 %822
        %v825 = vsel %vm709, %v820, 0
        %v828 = vsel %vm709, %v823, 0
        %830 = vmatprep.subr.bf16.mxu0 0
        %831 = vmatpush1.bf16.xpose.msra.mxu0 %v828
        %832 = vmatprep.subr.bf16.mxu0 0
        %833 = vmatpush1.bf16.xpose.msra.mxu0 0
        %834 = vmatprep.subr.bf16.mxu0 0
        %835 = vmatpush1.bf16.xpose.msra.mxu0 0
        %836 = vmatprep.subr.bf16.mxu0 0
        %837 = vmatpush1.bf16.xpose.msra.mxu0 0
        %838 = vmatprep.subr.bf16.mxu0 0
        %839 = vmatpush1.bf16.xpose.msra.mxu0 0
        %840 = vmatprep.subr.bf16.mxu0 0
        %841 = vmatpush1.bf16.xpose.msra.mxu0 0
        %842 = vmatprep.subr.bf16.mxu0 0
        %843 = vmatpush1.bf16.xpose.msra.mxu0 0
        %844 = vmatprep.subr.bf16.mxu0 0
        %845 = vmatpush1.bf16.xpose.msra.mxu0 0
        %846 = vmatprep.subr.bf16.mxu0 0
        %847 = vmatpush1.bf16.xpose.msra.mxu0 0
        %848 = vmatprep.subr.bf16.mxu0 0
        %849 = vmatpush1.bf16.xpose.msra.mxu0 0
        %850 = vmatprep.subr.bf16.mxu0 0
        %851 = vmatpush1.bf16.xpose.msra.mxu0 0
        %852 = vmatprep.subr.bf16.mxu0 0
        %853 = vmatpush1.bf16.xpose.msra.mxu0 0
        %854 = vmatprep.subr.bf16.mxu0 0
        %855 = vmatpush1.bf16.xpose.msra.mxu0 0
        %856 = vmatprep.subr.bf16.mxu0 0
        %857 = vmatpush1.bf16.xpose.msra.mxu0 0
        %858 = vmatprep.subr.bf16.mxu0 0
        %859 = vmatpush1.bf16.xpose.msra.mxu0 0
        %860 = vmatprep.subr.bf16.mxu0 0
        %861 = vmatpush1.bf16.xpose.msra.mxu0 0
        %862 = vmatprep.mubr.bf16.mxu0 0
        %863 = vmatmul.mubr.bf16.gmra.mrb[0].mxu0 %v825
        %v864 = vpop.f32.mrb[0].mxu0
        %v865 = vadd.f32 0.0, %v864
        %v866 = vpop.f32.mrb[0].mxu0
        %v867 = vpop.f32.mrb[0].mxu0
        %v868 = vpop.f32.mrb[0].mxu0
        %869 = vdwg.mxu0
        %v870 = vmul.f32 %v865, 0.25
        %v871 = vadd.f32 %v870, %v708
        %v872 = vsel %vm758, %v871, -inf
        %873 = vmax.xlane.f32.xlu0 %v872
        %v874 = vpop.xlane.xlu0 %873
        %v875 = vsub.f32 %v871, %v874
        %v876 = vmul.f32 %v875, 1.442695
        %v877 = vpow.pop %v876
        %v878 = vsel %vm758, %v877, 0.0
        %879 = vadd.xlane.f32.xlu0 %v878
        %v880 = vpop.xlane.xlu0 %879
        %v881 = vrcp.pop %v880
        %v882 = vmul.f32 %v877, %v881
        %v883 = vpack.c.bf16 %v882, %v882
        %885 = vrot.lane.b32.xlu0 %v707, 112
        %v886 = vpop.permute.xlu0 %885
        %v888 = vsel %vm758, %v883, 0
        %v891 = vsel %vm774, %v886, 0
        %893 = vmatprep.subr.bf16.mxu0 0
        %894 = vmatpush1.bf16.msra.mxu0 %v891
        %895 = vmatprep.subr.bf16.mxu0 0
        %896 = vmatpush1.bf16.msra.mxu0 0
        %897 = vmatprep.subr.bf16.mxu0 0
        %898 = vmatpush1.bf16.msra.mxu0 0
        %899 = vmatprep.subr.bf16.mxu0 0
        %900 = vmatpush1.bf16.msra.mxu0 0
        %901 = vmatprep.subr.bf16.mxu0 0
        %902 = vmatpush1.bf16.msra.mxu0 0
        %903 = vmatprep.subr.bf16.mxu0 0
        %904 = vmatpush1.bf16.msra.mxu0 0
        %905 = vmatprep.subr.bf16.mxu0 0
        %906 = vmatpush1.bf16.msra.mxu0 0
        %907 = vmatprep.subr.bf16.mxu0 0
        %908 = vmatpush1.bf16.msra.mxu0 0
        %909 = vmatprep.subr.bf16.mxu0 0
        %910 = vmatpush1.bf16.msra.mxu0 0
        %911 = vmatprep.subr.bf16.mxu0 0
        %912 = vmatpush1.bf16.msra.mxu0 0
        %913 = vmatprep.subr.bf16.mxu0 0
        %914 = vmatpush1.bf16.msra.mxu0 0
        %915 = vmatprep.subr.bf16.mxu0 0
        %916 = vmatpush1.bf16.msra.mxu0 0
        %917 = vmatprep.subr.bf16.mxu0 0
        %918 = vmatpush1.bf16.msra.mxu0 0
        %919 = vmatprep.subr.bf16.mxu0 0
        %920 = vmatpush1.bf16.msra.mxu0 0
        %921 = vmatprep.subr.bf16.mxu0 0
        %922 = vmatpush1.bf16.msra.mxu0 0
        %923 = vmatprep.subr.bf16.mxu0 0
        %924 = vmatpush1.bf16.msra.mxu0 0
        %925 = vmatprep.mubr.bf16.mxu0 0
        %926 = vmatmul.mubr.bf16.gmra.mrb[0].mxu0 %v888
        %v927 = vpop.f32.mrb[0].mxu0
        %v928 = vadd.f32 0.0, %v927
        %v929 = vpop.f32.mrb[0].mxu0
        %v930 = vpop.f32.mrb[0].mxu0
        %v931 = vpop.f32.mrb[0].mxu0
        %932 = vdwg.mxu0
        %934 = vrot.lane.b32.xlu0 %v928, 16
        %v935 = vpop.permute.xlu0 %934
        %v937 = vsel %vm709, %v813, %v935
        %v938 = vpack.c.bf16 %v937, %v937
        %v939 = vld [vmem:[#allocation10] sm:$0xf]
        %v940 = vld [vmem:[#allocation10 + $0x4] sm:$0xf]
        %v941 = vld [vmem:[#allocation10 + $0x8] sm:$0xf]
        %v942 = vld [vmem:[#allocation10 + $0xc] sm:$0xf]
        %v943 = vld [vmem:[%s9] sm:$0x1]
        %v945 = vlaneseq
        %v946 = vshrl.u32 %v945, 7
        %v947 = vsub.s32 0, %v946
        %v948 = vrot.slane %v943, %v947
        %v954 = vunpack.c.l.b16 %v939
        %v955 = vunpack.c.l.b16 %v940
        %v956 = vunpack.c.l.b16 %v941
        %v957 = vunpack.c.l.b16 %v942
        %v958 = vpack.c.b16 %v955, %v954
        %v959 = vpack.c.b16 %v957, %v956
        %v963 = vsel %vm535, %v938, 0
        %965 = vmatprep.subr.bf16.mxu0 0
        %966 = vmatpush1.bf16.msra.mxu0 %v958
        %967 = vmatprep.subr.bf16.mxu0 0
        %968 = vmatpush1.bf16.msra.mxu0 %v959
        %969 = vmatprep.subr.bf16.mxu0 0
        %970 = vmatpush1.bf16.msra.mxu0 0
        %971 = vmatprep.subr.bf16.mxu0 0
        %972 = vmatpush1.bf16.msra.mxu0 0
        %973 = vmatprep.subr.bf16.mxu0 0
        %974 = vmatpush1.bf16.msra.mxu0 0
        %975 = vmatprep.subr.bf16.mxu0 0
        %976 = vmatpush1.bf16.msra.mxu0 0
        %977 = vmatprep.subr.bf16.mxu0 0
        %978 = vmatpush1.bf16.msra.mxu0 0
        %979 = vmatprep.subr.bf16.mxu0 0
        %980 = vmatpush1.bf16.msra.mxu0 0
        %981 = vmatprep.subr.bf16.mxu0 0
        %982 = vmatpush1.bf16.msra.mxu0 0
        %983 = vmatprep.subr.bf16.mxu0 0
        %984 = vmatpush1.bf16.msra.mxu0 0
        %985 = vmatprep.subr.bf16.mxu0 0
        %986 = vmatpush1.bf16.msra.mxu0 0
        %987 = vmatprep.subr.bf16.mxu0 0
        %988 = vmatpush1.bf16.msra.mxu0 0
        %989 = vmatprep.subr.bf16.mxu0 0
        %990 = vmatpush1.bf16.msra.mxu0 0
        %991 = vmatprep.subr.bf16.mxu0 0
        %992 = vmatpush1.bf16.msra.mxu0 0
        %993 = vmatprep.subr.bf16.mxu0 0
        %994 = vmatpush1.bf16.msra.mxu0 0
        %995 = vmatprep.subr.bf16.mxu0 0
        %996 = vmatpush1.bf16.msra.mxu0 0
        %997 = vmatprep.mubr.bf16.mxu0 0
        %998 = vmatmul.mubr.bf16.gmra.mrb[0].mxu0 %v963
        %v999 = vpop.f32.mrb[0].mxu0
        %v1000 = vadd.f32 %v948, %v999
        %v1001 = vpop.f32.mrb[0].mxu0
        %v1002 = vpop.f32.mrb[0].mxu0
        %v1003 = vpop.f32.mrb[0].mxu0
        %1004 = vdwg.mxu0
        %v1005 = vadd.f32 %v1000, %v510
        %v1006 = vsel %vm535, %v1005, 0.0
        %1007 = vadd.xlane.f32.xlu0 %v1006
        %v1008 = vpop.xlane.xlu0 %1007
        %v1009 = vrcp.pop 32.0
        %v1010 = vmul.f32 %v1008, %v1009
        %v1011 = vsub.f32 %v1005, %v1010
        %v1012 = vmul.f32 %v1011, %v1011
        %v1013 = vsel %vm535, %v1012, 0.0
        %1014 = vadd.xlane.f32.xlu0 %v1013
        %v1015 = vpop.xlane.xlu0 %1014
        %v1016 = vmul.f32 %v1015, %v1009
        %v1017 = vadd.f32 %v1016, 1e-12
        %v1018 = vrsqrt.pop %v1017
        %v1019 = vmul.f32 %v1011, %v1018
        %v1020 = vld [vmem:[%s10] sm:$0x1]
        %v1022 = vlaneseq
        %v1023 = vshrl.u32 %v1022, 7
        %v1024 = vsub.s32 0, %v1023
        %v1025 = vrot.slane %v1020, %v1024
        %v1027 = vmul.f32 %v1025, %v1019
        %v1028 = vld [vmem:[%s11] sm:$0x1]
        %v1030 = vlaneseq
        %v1031 = vshrl.u32 %v1030, 7
        %v1032 = vsub.s32 0, %v1031
        %v1033 = vrot.slane %v1028, %v1032
        %v1035 = vadd.f32 %v1027, %v1033
        %1036 = vst.msk [vmem:[%s508] sm:$0xff] %vm535, %v1035
        %s1037 = sand.u32 %s303, 1
        %s1038 = scalar_lea.sflag [#allocation4], %s1037
        %s1039 = sand.u32 %s303, 1
        %s1040 = smul.addr %s1039, 8
        %s1041 = scalar_lea.vmem [#allocation11], %s1040
        // Predicated region
        $region89: #{tpu_custom_call.1} parent=67 // pred_check
          %p1042 = pneg %p313
        $region90: #{tpu_custom_call.1} parent=67 // pred_check_branch
          %1044 = sbr.rel (%p1042) target = $region92
        $region91: #{tpu_custom_call.1} parent=67 // pred_region
          %s1046 = ssub.s32 128, 128
          %1047 = vsyncadd %s1038, %s1046
          %s1048 = smul.addr %s33, 128
          %s1049 = scalar_lea.hbm %s12, %s1048
          %s1051 = sshll.u32 %s1041, 4
          %s1052 = int_to_ptr.vmem [resolvable:$true] %s1051
          %1054 = dma.vmem_to_hbm [thread:$0]  %s1052, 128, %s1049, %s1038
        $region92: #{tpu_custom_call.1} parent=67 // pred_fallthru
          _
      $region68: #{tpu_custom_call.1} parent=5 // pred_fallthru
        _
      %p1055 = scmp.le.s32.totalorder 2, %s28
      // Predicated region
      $region93: #{tpu_custom_call.1} parent=5 // pred_check
        %p1056 = pneg %p1055
      $region94: #{tpu_custom_call.1} parent=5 // pred_check_branch
        %1058 = sbr.rel (%p1056) target = $region96
      $region95: #{tpu_custom_call.1} parent=5 // pred_region
        %s1059 = ssub.s32 %s28, 2
        // Predicated region
        $region97: #{tpu_custom_call.1} parent=95 // pred_check
          %p1060 = pneg %p319
        $region98: #{tpu_custom_call.1} parent=95 // pred_check_branch
          %1062 = sbr.rel (%p1060) target = $region100
        $region99: #{tpu_custom_call.1} parent=95 // pred_region
          %s1063 = sand.u32 %s304, 1
          %s1064 = scalar_lea.sflag [#allocation4], %s1063
          %s1065 = sand.u32 %s304, 1
          %s1066 = smul.addr %s1065, 8
          %s1067 = scalar_lea.vmem [#allocation11], %s1066
          %1068 = dma.done %s1064, 128
        $region100: #{tpu_custom_call.1} parent=95 // pred_fallthru
          _
      $region96: #{tpu_custom_call.1} parent=5 // pred_fallthru
        _
    $region6: #{tpu_custom_call.1} parent=1 // loop_footer
      %s32 = sadd.s32 1, %s28
    $region7: #{tpu_custom_call.1} parent=1 // loop_footer_branch
      %27 = sbr.rel target = $region3
    $region8: #{tpu_custom_call.1} parent=1 // loop_exit
      _
    %1069 = vsyncpa [#allocation3], 1
    %s1070 = scalar_lea.sflag [#allocation3], 1
    %1071 = vsyncpa %s1070, 1
    %1072 = vsyncpa [#allocation6], 1
    %s1073 = scalar_lea.sflag [#allocation6], 1
    %1074 = vsyncpa %s1073, 1
    %1075 = vsyncpa [#allocation9], 1
    %1076 = vsyncpa [#allocation4], 1
    %s1077 = scalar_lea.sflag [#allocation4], 1
    %1078 = vsyncpa %s1077, 1

</llo_original>
